<compile_context>
chip_gen: v7x
topology: tpu7x:2x2x1
jax: 0.10.0
libtpu: 0.0.40
codegen_flags: <defaults>
</compile_context>

<pallas_src>
import functools

import jax
import jax.numpy as jnp
from jax.experimental import pallas as pl
from jax.experimental.pallas import tpu as pltpu

LANE = 128
TILE_R_MAX = 4096          # (4096, 128) f32 block = 2 MiB per input; 2 inputs
                           # x 2 pipeline buffers = 8 MiB VMEM -> fits default
                           # scoped VMEM on every generation (16 MiB on v5e).
IGNORE_INDEX = 0.0


def _num_shards_for_device():
    """Leading 'parallel' axis size: 2 only on dual-TensorCore chips (v7x)."""
    try:
        kind = jax.devices()[0].device_kind.lower()
    except Exception:
        return 1
    return 2 if "v7" in kind else 1


def _elementwise_err(x_ref, t_ref):
    x = x_ref[...].astype(jnp.float32)
    t = t_ref[...].astype(jnp.float32)
    diff = jnp.maximum(x, 0.0) - t                       # relu(x) - target
    err = jnp.where(t != IGNORE_INDEX, jnp.abs(diff), 0.0)
    return diff, err


def _row_valid_mask(shape, g, tile_r, rows):
    row = g * tile_r + jax.lax.broadcasted_iota(jnp.int32, shape, 0)
    return row < rows


def _max_err_kernel(x_ref, t_ref, out_ref, acc_ref, *, inner, tile_r, rows,
                    nblocks, partial_last, has_overhang, acc_rows):
    p = pl.program_id(0)
    i = pl.program_id(1)
    g = p * inner + i                                    # global row-block idx

    @pl.when(i == 0)
    def _():
        acc_ref[...] = jnp.zeros_like(acc_ref)           # err >= 0: 0 is neutral

    def accumulate(masked):
        _, err = _elementwise_err(x_ref, t_ref)
        if masked:
            err = jnp.where(_row_valid_mask(err.shape, g, tile_r, rows),
                            err, 0.0)
        blk = jnp.max(err.reshape(-1, acc_rows, LANE), axis=0)  # VALU tree
        acc_ref[...] = jnp.maximum(acc_ref[...], blk)

    if partial_last:
        @pl.when(jnp.logical_and(g < nblocks, g != nblocks - 1))
        def _():
            accumulate(masked=False)

        @pl.when(g == nblocks - 1)
        def _():
            accumulate(masked=True)
    elif has_overhang:
        @pl.when(g < nblocks)                            # skip overhang dupes
        def _():
            accumulate(masked=False)
    else:
        accumulate(masked=False)

    @pl.when(i == inner - 1)
    def _():
        out_ref[0] = jnp.max(acc_ref[...], keepdims=True)


def _cost_sum_kernel(params_ref, x_ref, t_ref, out_ref, acc_ref, *, inner,
                     tile_r, rows, nblocks, partial_last, has_overhang,
                     acc_rows):
    p = pl.program_id(0)
    i = pl.program_id(1)
    g = p * inner + i
    c = params_ref[0]
    c_sq = params_ref[1]
    inv_2c = params_ref[2]

    @pl.when(i == 0)
    def _():
        acc_ref[...] = jnp.zeros_like(acc_ref)

    def accumulate(masked):
        diff, err = _elementwise_err(x_ref, t_ref)
        err2 = (diff * diff + c_sq) * inv_2c             # no vector divide
        cost = jnp.where(err <= c, err, err2)
        if masked:
            cost = jnp.where(_row_valid_mask(cost.shape, g, tile_r, rows),
                             cost, 0.0)
        acc_ref[...] += jnp.sum(cost.reshape(-1, acc_rows, LANE), axis=0)

    if partial_last:
        @pl.when(jnp.logical_and(g < nblocks, g != nblocks - 1))
        def _():
            accumulate(masked=False)

        @pl.when(g == nblocks - 1)
        def _():
            accumulate(masked=True)
    elif has_overhang:
        @pl.when(g < nblocks)
        def _():
            accumulate(masked=False)
    else:
        accumulate(masked=False)

    @pl.when(i == inner - 1)
    def _():
        out_ref[0] = jnp.sum(acc_ref[...], keepdims=True)


def _flatten_lane(x, target):
    n = x.size
    xf = x.reshape(-1)
    tf = target.reshape(-1)
    pad = (-n) % LANE
    if pad:  # <128 trailing elements; pad values contribute 0 to max and sum
        xf = jnp.pad(xf, (0, pad))
        tf = jnp.pad(tf, (0, pad), constant_values=IGNORE_INDEX)
    rows = (n + pad) // LANE
    return xf.reshape(rows, LANE), tf.reshape(rows, LANE), n, rows


def _pick_tile_rows(rows):
    if rows >= TILE_R_MAX:
        return TILE_R_MAX
    if rows >= 8:
        return (rows // 8) * 8        # multiple of 8, <= rows
    return rows                       # tiny input: block equals full dim


def inv_huber_loss(x, target):
    x2d, t2d, n, rows = _flatten_lane(x, target)
    tile_r = _pick_tile_rows(rows)
    nblocks = pl.cdiv(rows, tile_r)
    max_shards = _num_shards_for_device()
    num_shards = max_shards if nblocks >= max_shards else 1
    inner = pl.cdiv(nblocks, num_shards)
    partial_last = (rows % tile_r) != 0
    has_overhang = (nblocks % num_shards) != 0
    acc_rows = 8 if tile_r % 8 == 0 else tile_r

    def row_block(p, i):
        # Clamp so a shard's overhang step never issues an out-of-bounds DMA;
        # that step's accumulation is skipped entirely in-kernel via pl.when.
        return (jnp.minimum(p * inner + i, nblocks - 1), 0)

    tile_spec = pl.BlockSpec((tile_r, LANE), row_block)
    acc_spec = pl.BlockSpec((1, 1, 1), lambda p, i: (p, 0, 0))
    acc_shape = jax.ShapeDtypeStruct((num_shards, 1, 1), jnp.float32)
    static = dict(inner=inner, tile_r=tile_r, rows=rows, nblocks=nblocks,
                  partial_last=partial_last, has_overhang=has_overhang,
                  acc_rows=acc_rows)
    # TODO(synk): on v7x verify in a profile that the leading axis lands on
    # both TensorCores; if not, switch it to pltpu.CORE_PARALLEL semantics.
    cparams = pltpu.CompilerParams(
        dimension_semantics=("parallel", "arbitrary"))

    # Pass 1: global max of err (per-shard partials).
    err_max_parts = pl.pallas_call(
        functools.partial(_max_err_kernel, **static),
        out_shape=acc_shape,
        grid_spec=pltpu.PrefetchScalarGridSpec(
            num_scalar_prefetch=0,
            grid=(num_shards, inner),
            in_specs=[tile_spec, tile_spec],
            out_specs=acc_spec,
            scratch_shapes=[pltpu.VMEM((acc_rows, LANE), jnp.float32)]),
        compiler_params=cparams,
    )(x2d, t2d)

    c = 0.2 * jnp.max(err_max_parts)
    # TODO(synk): c == 0 (all errors zero / all targets ignored) makes 1/(2c)
    # inf; the where-select keeps the returned cost finite (0) whereas the
    # PyTorch reference produces nan in that degenerate case.
    params = jnp.stack([c, c * c, 1.0 / (2.0 * c)]).astype(jnp.float32)

    # Pass 2: global sum of the inverse-Huber cost (per-shard partials).
    cost_parts = pl.pallas_call(
        functools.partial(_cost_sum_kernel, **static),
        out_shape=acc_shape,
        grid_spec=pltpu.PrefetchScalarGridSpec(
            num_scalar_prefetch=0,
            grid=(num_shards, inner),
            in_specs=[pl.BlockSpec(memory_space=pltpu.MemorySpace.SMEM),
                      tile_spec, tile_spec],
            out_specs=acc_spec,
            scratch_shapes=[pltpu.VMEM((acc_rows, LANE), jnp.float32)]),
        compiler_params=cparams,
    )(params, x2d, t2d)

    return jnp.sum(cost_parts) / jnp.float32(n)


def _ref_inv_huber_loss(x, target):
    """Pure-JAX reference mirroring the PyTorch module."""
    inp = jnp.maximum(x, 0.0)
    diff = inp - target
    mask = (target != IGNORE_INDEX).astype(jnp.float32)
    err = jnp.abs(diff * mask)
    c = 0.2 * jnp.max(err)
    err2 = (diff ** 2 + c ** 2) / (2.0 * c)
    return jnp.mean(err * (err <= c).astype(jnp.float32)
                    + err2 * (err > c).astype(jnp.float32))


if __name__ == "__main__":
    key = jax.random.PRNGKey(0)
    kx, kt, km = jax.random.split(key, 3)

    B, C, H, W = 2, 4, 16, 16          # NCHW, as in the PyTorch module
    x = jax.random.normal(kx, (B, C, H, W), dtype=jnp.float32)
    depth = jax.random.uniform(kt, (B, C, H, W), dtype=jnp.float32) * 5.0
    valid = jax.random.uniform(km, (B, C, H, W)) > 0.3
    target = jnp.where(valid, depth, IGNORE_INDEX)   # some ignored pixels

    loss = inv_huber_loss(x, target)
    jax.block_until_ready(loss)

    ref = _ref_inv_huber_loss(x, target)
    assert jnp.allclose(loss, ref, rtol=1e-5, atol=1e-5), (loss, ref)

    print("KERNEL_OK")
</pallas_src>

<mosaic_0001>
module attributes {stable_mosaic.version = 11 : i64} {
  func.func @_max_err_kernel(%arg0: i32, %arg1: i32, %arg2: memref<16x128xf32, #tpu.memory_space<vmem>>, %arg3: memref<16x128xf32, #tpu.memory_space<vmem>>, %arg4: memref<1x1x1xf32, #tpu.memory_space<vmem>>, %arg5: memref<8x128xf32, #tpu.memory_space<vmem>>) attributes {dimension_semantics = [#tpu.dimension_semantics<parallel>, #tpu.dimension_semantics<arbitrary>], iteration_bounds = array<i64: 1, 1>, scalar_prefetch = 0 : i64, scratch_operands = 1 : i64, tpu.core_type = #tpu.core_type<tc>, window_params = [{transform_indices = @transform_0, window_bounds = array<i64: 16, 128>}, {transform_indices = @transform_1, window_bounds = array<i64: 16, 128>}, {transform_indices = @transform_2, window_bounds = array<i64: 1, 1, 1>}]} {
    %c0_i32 = arith.constant 0 : i32
    %0 = arith.cmpi eq, %arg1, %c0_i32 : i32
    %1 = arith.extui %0 : i1 to i32
    %c0_i32_0 = arith.constant 0 : i32
    %2 = arith.cmpi ne, %1, %c0_i32_0 : i32
    scf.if %2 {
      %cst_13 = arith.constant 0.000000e+00 : f32
      %21 = vector.broadcast %cst_13 : f32 to vector<8x128xf32>
      %c0_14 = arith.constant 0 : index
      %c0_15 = arith.constant 0 : index
      %22 = vector.load %arg5[%c0_14, %c0_15] : memref<8x128xf32, #tpu.memory_space<vmem>>, vector<8x128xf32>
      tpu.vector_store %arg5[%c0_14, %c0_15], %21 {strides = array<i32>} : memref<8x128xf32, #tpu.memory_space<vmem>>, vector<8x128xf32>,
    } else {
    }
    %c0 = arith.constant 0 : index
    %c0_1 = arith.constant 0 : index
    %3 = vector.load %arg2[%c0, %c0_1] : memref<16x128xf32, #tpu.memory_space<vmem>>, vector<16x128xf32>
    %c0_2 = arith.constant 0 : index
    %c0_3 = arith.constant 0 : index
    %4 = vector.load %arg3[%c0_2, %c0_3] : memref<16x128xf32, #tpu.memory_space<vmem>>, vector<16x128xf32>
    %cst = arith.constant 0.000000e+00 : f32
    %5 = vector.broadcast %cst : f32 to vector<16x128xf32>
    %6 = arith.maximumf %3, %5 : vector<16x128xf32>
    %7 = arith.subf %6, %4 : vector<16x128xf32>
    %cst_4 = arith.constant 0.000000e+00 : f32
    %8 = vector.broadcast %cst_4 : f32 to vector<16x128xf32>
    %9 = arith.cmpf one, %4, %8 : vector<16x128xf32>
    %10 = math.absf %7 : vector<16x128xf32>
    %cst_5 = arith.constant 0.000000e+00 : f32
    %11 = vector.broadcast %cst_5 : f32 to vector<16x128xf32>
    %12 = arith.select %9, %10, %11 : vector<16x128xi1>, vector<16x128xf32>
    %13 = vector.shape_cast %12 : vector<16x128xf32> to vector<2x8x128xf32>
    %cst_6 = arith.constant dense<0xFF800000> : vector<8x128xf32>
    %14 = vector.multi_reduction <maximumf>, %13, %cst_6 [0] : vector<2x8x128xf32> to vector<8x128xf32>
    %c0_7 = arith.constant 0 : index
    %c0_8 = arith.constant 0 : index
    %15 = vector.load %arg5[%c0_7, %c0_8] : memref<8x128xf32, #tpu.memory_space<vmem>>, vector<8x128xf32>
    %16 = arith.maximumf %15, %14 : vector<8x128xf32>
    %c0_9 = arith.constant 0 : index
    %c0_10 = arith.constant 0 : index
    %17 = vector.load %arg5[%c0_9, %c0_10] : memref<8x128xf32, #tpu.memory_space<vmem>>, vector<8x128xf32>
    tpu.vector_store %arg5[%c0_9, %c0_10], %16 {strides = array<i32>} : memref<8x128xf32, #tpu.memory_space<vmem>>, vector<8x128xf32>,
    %c0_i32_11 = arith.constant 0 : i32
    %18 = arith.cmpi eq, %arg1, %c0_i32_11 : i32
    %19 = arith.extui %18 : i1 to i32
    %c0_i32_12 = arith.constant 0 : i32
    %20 = arith.cmpi ne, %19, %c0_i32_12 : i32
    scf.if %20 {
      %c0_13 = arith.constant 0 : index
      %c0_14 = arith.constant 0 : index
      %21 = vector.load %arg5[%c0_13, %c0_14] : memref<8x128xf32, #tpu.memory_space<vmem>>, vector<8x128xf32>
      %22 = vector.shape_cast %21 : vector<8x128xf32> to vector<1x8x128xf32>
      %cst_15 = arith.constant dense<0xFF800000> : vector<1xf32>
      %23 = vector.multi_reduction <maximumf>, %22, %cst_15 [1, 2] : vector<1x8x128xf32> to vector<1xf32>
      %24 = vector.shape_cast %23 : vector<1xf32> to vector<1x1x1xf32>
      %25 = vector.extract %24[0, 0, 0] : f32 from vector<1x1x1xf32>
      %26 = vector.broadcast %25 : f32 to vector<1x1xf32>
      %c0_16 = arith.constant 0 : index
      %c0_17 = arith.constant 0 : index
      %c0_18 = arith.constant 0 : index
      %27 = vector.load %arg4[%c0_16, %c0_17, %c0_18] : memref<1x1x1xf32, #tpu.memory_space<vmem>>, vector<1x1x1xf32>
      %28 = vector.shape_cast %27 : vector<1x1x1xf32> to vector<1x1xf32>
      %29 = vector.shape_cast %26 : vector<1x1xf32> to vector<1x1x1xf32>
      tpu.vector_store %arg4[%c0_16, %c0_17, %c0_18], %29 {strides = array<i32>} : memref<1x1x1xf32, #tpu.memory_space<vmem>>, vector<1x1x1xf32>,
    } else {
    }
    return
  }
  func.func @transform_0(%arg0: i32, %arg1: i32) -> (i32, i32) {
    %c1_i32 = arith.constant 1 : i32
    %0 = arith.muli %arg0, %c1_i32 : i32
    %1 = arith.addi %0, %arg1 : i32
    %c0_i32 = arith.constant 0 : i32
    %2 = arith.minsi %1, %c0_i32 : i32
    %c0_i32_0 = arith.constant 0 : i32
    %c0_i32_1 = arith.constant 0 : i32
    return %2, %c0_i32_0 : i32, i32
  }
  func.func @transform_1(%arg0: i32, %arg1: i32) -> (i32, i32) {
    %c1_i32 = arith.constant 1 : i32
    %0 = arith.muli %arg0, %c1_i32 : i32
    %1 = arith.addi %0, %arg1 : i32
    %c0_i32 = arith.constant 0 : i32
    %2 = arith.minsi %1, %c0_i32 : i32
    %c0_i32_0 = arith.constant 0 : i32
    %c0_i32_1 = arith.constant 0 : i32
    return %2, %c0_i32_0 : i32, i32
  }
  func.func @transform_2(%arg0: i32, %arg1: i32) -> (i32, i32, i32) {
    %c0_i32 = arith.constant 0 : i32
    %c0_i32_0 = arith.constant 0 : i32
    %c0_i32_1 = arith.constant 0 : i32
    return %arg0, %c0_i32, %c0_i32_0 : i32, i32, i32
  }
}

</mosaic_0001>

<llo_original>
// kernel: tpu_custom_call.1
$region0: #{tpu_custom_call.1}
  #allocation0 [shape = 'u32[]', space=smem, size = 0x4, offset = 0x4, fixed_abs, tag = 'smem constant byte address 0x4 - core index']
  #allocation1 [shape = 'u32[144,128]{1,0:T(1,128)}', space=vmem, size = 0x12000, scoped, tag = 'internal scratch']
  #allocation2 [shape = 'f32[8,128]{1,0:T(8,128)}', space=vmem, size = 0x1000, scoped, tag = 'scratch operand']
  %s0 = inlined_call_operand.hbm [shape: f32[16,128], index: 0, kind: input, shape index: {}]
  %s1 = inlined_call_operand.hbm [shape: f32[16,128], index: 1, kind: input, shape index: {}]
  %s2 = inlined_call_operand.hbm [shape: f32[1,1,1], index: 2, kind: output, shape index: {}]
  %s3 = sld [smem:[#allocation0]]
  $region34: #{tpu_custom_call.1} parent=0
    _
  %s5 = ssub.s32 1, %s3
  %s6 = scalar_select 0, %s5, %s3
  $region1: #{tpu_custom_call.1} parent=0
    #allocation3 [shape = 'u8[8192]{0}', space=vmem, size = 0x2000, scoped, tag = 'input window, operand 0, single buffered']
    #allocation4 [shape = 's32[1]{0}', space=sflag, size = 0x4, scoped, tag = 'scoped memory for tpu_custom_call.1']
    #allocation5 [shape = 's32[1]{0}', space=sflag, size = 0x4, scoped, tag = 'scoped memory for tpu_custom_call.1']
    #allocation6 [shape = 'u8[8192]{0}', space=vmem, size = 0x2000, scoped, tag = 'input window, operand 1, single buffered']
    #allocation7 [shape = 's32[1]{0}', space=sflag, size = 0x4, scoped, tag = 'scoped memory for tpu_custom_call.1']
    #allocation8 [shape = 'u8[512]{0}', space=vmem, size = 0x400, scoped, tag = 'output window, operand 0, single buffered']
    %7 = vsyncpa [#allocation4], 0
    %8 = vsyncpa [#allocation7], 0
    %9 = vsyncpa [#allocation5], 0
    // Predicated region
    $region2: #{tpu_custom_call.1} parent=1 // pred_check
      _
    $region3: #{tpu_custom_call.1} parent=1 // pred_check_branch
      %11 = sbr.rel (0) target = $region5
    $region4: #{tpu_custom_call.1} parent=1 // pred_region
      %s12 = sadd.s32 0, 0
      %p13 = scmp.lt.s32.totalorder %s12, 0
      %s14 = scalar_select %p13, %s12, 0
      %s15 = smul.u32 2, %s14
      %s17 = ssub.s32 256, 256
      %18 = vsyncadd [#allocation4], %s17
      %s19 = smul.addr %s15, 128
      %s20 = scalar_lea.hbm %s0, %s19
      %s21 = sshll.u32 [#allocation3], 4
      %s22 = int_to_ptr.vmem [resolvable:$true] %s21
      %27 = dma.hbm_to_vmem [thread:$0]  %s20, 256, %s22, [#allocation4], 128, 128, 8
    $region5: #{tpu_custom_call.1} parent=1 // pred_fallthru
      _
    // Predicated region
    $region6: #{tpu_custom_call.1} parent=1 // pred_check
      _
    $region7: #{tpu_custom_call.1} parent=1 // pred_check_branch
      %29 = sbr.rel (0) target = $region9
    $region8: #{tpu_custom_call.1} parent=1 // pred_region
      %s30 = sadd.s32 0, 0
      %p31 = scmp.lt.s32.totalorder %s30, 0
      %s32 = scalar_select %p31, %s30, 0
      %s33 = smul.u32 2, %s32
      %s35 = ssub.s32 256, 256
      %36 = vsyncadd [#allocation7], %s35
      %s37 = smul.addr %s33, 128
      %s38 = scalar_lea.hbm %s1, %s37
      %s39 = sshll.u32 [#allocation6], 4
      %s40 = int_to_ptr.vmem [resolvable:$true] %s39
      %45 = dma.hbm_to_vmem [thread:$0]  %s38, 256, %s40, [#allocation7], 128, 128, 8
    $region9: #{tpu_custom_call.1} parent=1 // pred_fallthru
      _
    // Predicated region
    $region10: #{tpu_custom_call.1} parent=1 // pred_check
      _
    $region11: #{tpu_custom_call.1} parent=1 // pred_check_branch
      %47 = sbr.rel (0) target = $region13
    $region12: #{tpu_custom_call.1} parent=1 // pred_region
      %48 = dma.done [#allocation4], 256
    $region13: #{tpu_custom_call.1} parent=1 // pred_fallthru
      _
    // Predicated region
    $region14: #{tpu_custom_call.1} parent=1 // pred_check
      _
    $region15: #{tpu_custom_call.1} parent=1 // pred_check_branch
      %50 = sbr.rel (0) target = $region17
    $region16: #{tpu_custom_call.1} parent=1 // pred_region
      %51 = dma.done [#allocation7], 256
    $region17: #{tpu_custom_call.1} parent=1 // pred_fallthru
      _
    %s52 = sadd.s32 0, 0
    %p53 = scmp.lt.s32.totalorder %s52, 0
    %s54 = scalar_select %p53, %s52, 0
    %s55 = smul.u32 2, %s54
    %s56 = sadd.s32 0, 0
    %p57 = scmp.lt.s32.totalorder %s56, 0
    %s58 = scalar_select %p57, %s56, 0
    %s59 = smul.u32 2, %s58
    %p60 = scmp.eq.s32.totalorder 0, 0
    // Predicated region
    $region18: #{tpu_custom_call.1} parent=1 // pred_check
      %p61 = pneg %p60
    $region19: #{tpu_custom_call.1} parent=1 // pred_check_branch
      %63 = sbr.rel (%p61) target = $region21
    $region20: #{tpu_custom_call.1} parent=1 // pred_region
      %64 = vst [vmem:[#allocation2] sm:$0xff] 0.0
    $region21: #{tpu_custom_call.1} parent=1 // pred_fallthru
      _
    %v65 = vld [vmem:[#allocation3] sm:$0xff]
    %v66 = vld [vmem:[#allocation3 + $0x8] sm:$0xff]
    %v67 = vld [vmem:[#allocation6] sm:$0xff]
    %v68 = vld [vmem:[#allocation6 + $0x8] sm:$0xff]
    %v69 = vmax.f32 %v65, 0.0
    %v70 = vmax.f32 %v66, 0.0
    %v71 = vsub.f32 %v69, %v67
    %v72 = vsub.f32 %v70, %v68
    %vm73 = vcmp.ne.f32.partialorder %v67, 0.0
    %vm74 = vcmp.ne.f32.partialorder %v68, 0.0
    %v75 = vand.u32 2147483647, %v71
    %v76 = vand.u32 2147483647, %v72
    %v77 = vsel %vm73, %v75, 0.0
    %v78 = vsel %vm74, %v76, 0.0
    %v79 = vmax.f32 %v77, %v78
    %v80 = vld [vmem:[#allocation2] sm:$0xff]
    %v81 = vmax.f32 %v80, %v79
    %82 = vst [vmem:[#allocation2] sm:$0xff] %v81
    // Predicated region
    $region22: #{tpu_custom_call.1} parent=1 // pred_check
      %p83 = pneg %p60
    $region23: #{tpu_custom_call.1} parent=1 // pred_check_branch
      %85 = sbr.rel (%p83) target = $region25
    $region24: #{tpu_custom_call.1} parent=1 // pred_region
      %v86 = vld [vmem:[#allocation2] sm:$0xff]
      %87 = vmax.xlane.f32.xlu0 %v86
      %v88 = vpop.xlane.xlu0 %87
      %v89 = vrot.slane %v88, 4
      %v90 = vmax.f32 %v88, %v89
      %v91 = vrot.slane %v90, 2
      %v92 = vmax.f32 %v90, %v91
      %v93 = vrot.slane %v92, 1
      %v94 = vmax.f32 %v92, %v93
      %s95 = vtos %v94
      %v96 = vstv %s95
      %vm97 = vcmask 0
      %98 = vst.msk [vmem:[#allocation8] sm:$0x1] %vm97, %v96
    $region25: #{tpu_custom_call.1} parent=1 // pred_fallthru
      _
    // Predicated region
    $region26: #{tpu_custom_call.1} parent=1 // pred_check
      _
    $region27: #{tpu_custom_call.1} parent=1 // pred_check_branch
      %100 = sbr.rel (0) target = $region29
    $region28: #{tpu_custom_call.1} parent=1 // pred_region
      %s102 = ssub.s32 16, 16
      %103 = vsyncadd [#allocation5], %s102
      %s105 = sshll.u32 [#allocation8], 4
      %s106 = int_to_ptr.vmem [resolvable:$true] %s105
      %108 = dma.vmem_to_hbm [thread:$0]  %s106, 16, %s2, [#allocation5]
    $region29: #{tpu_custom_call.1} parent=1 // pred_fallthru
      _
    // Predicated region
    $region30: #{tpu_custom_call.1} parent=1 // pred_check
      _
    $region31: #{tpu_custom_call.1} parent=1 // pred_check_branch
      %110 = sbr.rel (0) target = $region33
    $region32: #{tpu_custom_call.1} parent=1 // pred_region
      %111 = dma.done [#allocation5], 16
    $region33: #{tpu_custom_call.1} parent=1 // pred_fallthru
      _
    %112 = vsyncpa [#allocation4], 1
    %113 = vsyncpa [#allocation7], 1
    %114 = vsyncpa [#allocation5], 1

</llo_original>
